<compile_context>
chip_gen: v7x
topology: tpu7x:2x2x1
jax: 0.10.0
libtpu: 0.0.40
codegen_flags: <defaults>
</compile_context>

<pallas_src>
import jax
import jax.numpy as jnp
from jax.experimental import pallas as pl
from jax.experimental.pallas import tpu as pltpu

_LANE = 128
_SUBLANE = 8


def _round_up(n: int, m: int) -> int:
    return ((n + m - 1) // m) * m


def mlp_kernel(x_ref, w1_ref, b1_ref, w2_ref, b2_ref, o_ref):
    x = x_ref[...]
    # Narrow-compute path: cast in-kernel (VPU, free) instead of a separate wrapper XLA pass.
    if x.dtype != w1_ref.dtype:
        x = x.astype(w1_ref.dtype)
    # Layer 1: x @ W1 (MXU, f32 accumulate) + b1, ReLU (f32 epilogue — fine on v5e too).
    h = jnp.dot(x, w1_ref[...], preferred_element_type=jnp.float32)
    h = jnp.maximum(h + b1_ref[...], 0.0)
    # Only downcast activations if the second layer's weights are narrower (e.g. bf16).
    if w2_ref.dtype != jnp.float32:
        h = h.astype(w2_ref.dtype)
    # Layer 2: h @ W2 + b2.  Output block spans the full (unpadded) act_dim.
    out = jnp.dot(h, w2_ref[...], preferred_element_type=jnp.float32)
    o_ref[...] = (out + b2_ref[...]).astype(o_ref.dtype)


def prepare_params(w1, b1, w2, b2, *, compute_dtype=None):
    """Pad/cast weights ONCE (hoist out of the rollout loop).

    w1: (obs_dim, hidden); b1: (hidden,); w2: (hidden, act_dim); b2: (act_dim,).
    Hidden is zero-padded to a multiple of 128 (exact: padded columns stay 0 through
    bias+ReLU+matmul).  act_dim is NOT padded — the HBM output stays unpadded.
    """
    obs_dim, hidden = w1.shape
    act_dim = w2.shape[1]
    hidden_p = _round_up(max(hidden, _LANE), _LANE)
    wdt = jnp.dtype(compute_dtype) if compute_dtype is not None else w1.dtype

    w1_p = jnp.zeros((obs_dim, hidden_p), wdt).at[:, :hidden].set(w1.astype(wdt))
    b1_p = jnp.zeros((1, hidden_p), jnp.float32).at[0, :hidden].set(b1.astype(jnp.float32))
    w2_p = jnp.zeros((hidden_p, act_dim), wdt).at[:hidden, :].set(w2.astype(wdt))
    b2_p = b2.astype(jnp.float32).reshape(1, act_dim)
    return (w1_p, b1_p, w2_p, b2_p)


def policy_network_apply(x, params, *, block_b=4096, out_dtype=None):
    """Forward pass with pre-prepared (padded/cast) params.  x: (B, obs_dim)."""
    w1_p, b1_p, w2_p, b2_p = params
    B, obs_dim = x.shape
    hidden_p = w1_p.shape[1]
    act_dim = w2_p.shape[1]
    out_dtype = x.dtype if out_dtype is None else jnp.dtype(out_dtype)

    # Sublane multiple: packed dtypes tile sublanes in pairs/quads (16 rows bf16, 32 rows int8).
    min_itemsize = min(jnp.dtype(x.dtype).itemsize,
                       jnp.dtype(w1_p.dtype).itemsize,
                       jnp.dtype(out_dtype).itemsize)
    sub = _SUBLANE * (4 // max(min_itemsize, 1))

    # Batch tiling: big tiles to amortize ~0.35 µs/step, but keep >= 2 tiles when the batch
    # allows it so v7x's two TensorCores both get work (dimension_semantics="parallel").
    b_sub = _round_up(B, sub)
    tb = min(_round_up(block_b, sub), b_sub)
    if b_sub >= 2 * sub:
        tb = min(tb, _round_up(pl.cdiv(b_sub, 2), sub))
    b_pad = _round_up(B, tb)
    x_p = x if b_pad == B else jnp.pad(x, ((0, b_pad - B), (0, 0)))
    grid = (b_pad // tb,)

    cost = pl.CostEstimate(
        flops=2 * b_pad * (obs_dim * hidden_p + hidden_p * act_dim),
        transcendentals=0,
        bytes_accessed=(x_p.size * x_p.dtype.itemsize
                        + w1_p.size * w1_p.dtype.itemsize + b1_p.size * 4
                        + w2_p.size * w2_p.dtype.itemsize + b2_p.size * 4
                        + b_pad * act_dim * out_dtype.itemsize),
    )

    out = pl.pallas_call(
        mlp_kernel,
        out_shape=jax.ShapeDtypeStruct((b_pad, act_dim), out_dtype),
        grid=grid,
        in_specs=[
            pl.BlockSpec((tb, obs_dim), lambda i: (i, 0)),        # x: streamed over batch
            pl.BlockSpec((obs_dim, hidden_p), lambda i: (0, 0)),  # W1: VMEM-resident
            pl.BlockSpec((1, hidden_p), lambda i: (0, 0)),        # b1: resident
            pl.BlockSpec((hidden_p, act_dim), lambda i: (0, 0)),  # W2: resident (act unpadded)
            pl.BlockSpec((1, act_dim), lambda i: (0, 0)),         # b2: resident
        ],
        out_specs=pl.BlockSpec((tb, act_dim), lambda i: (i, 0)),  # full-last-dim, unpadded store
        compiler_params=pltpu.CompilerParams(
            dimension_semantics=("parallel",),                    # v7x: shard batch tiles across TCs
        ),
        cost_estimate=cost,
    )(x_p, w1_p, b1_p, w2_p, b2_p)

    return out if b_pad == B else out[:B]


def policy_network_forward(x, w1, b1, w2, b2, *, block_b=4096, compute_dtype=None, out_dtype=None):
    """Convenience wrapper: prepare params then apply (prefer prepare_params() once in a loop)."""
    params = prepare_params(w1, b1, w2, b2, compute_dtype=compute_dtype)
    return policy_network_apply(x, params, block_b=block_b, out_dtype=out_dtype)


def init_params(key, obs_dim, act_dim, hidden=64, dtype=jnp.float32):
    # Mirrors PyTorch nn.Linear default init: U(-1/sqrt(fan_in), 1/sqrt(fan_in)).
    k1, k2, k3, k4 = jax.random.split(key, 4)
    bound1 = 1.0 / jnp.sqrt(obs_dim)
    bound2 = 1.0 / jnp.sqrt(hidden)
    w1 = jax.random.uniform(k1, (obs_dim, hidden), dtype, -bound1, bound1)
    b1 = jax.random.uniform(k2, (hidden,), dtype, -bound1, bound1)
    w2 = jax.random.uniform(k3, (hidden, act_dim), dtype, -bound2, bound2)
    b2 = jax.random.uniform(k4, (act_dim,), dtype, -bound2, bound2)
    return w1, b1, w2, b2


def _reference(x, w1, b1, w2, b2):
    return jnp.maximum(x @ w1 + b1, 0.0) @ w2 + b2


if __name__ == "__main__":
    key = jax.random.PRNGKey(0)
    kx, kp, kx2 = jax.random.split(key, 3)

    obs_dim, act_dim = 32, 8
    w1, b1, w2, b2 = init_params(kp, obs_dim, act_dim)
    params = prepare_params(w1, b1, w2, b2)   # pad/cast once, reused across calls

    # Small single-tile case (matches the module's tiny eval shape).
    B_small = 8
    x_small = jax.random.normal(kx, (B_small, obs_dim), jnp.float32)
    out_small = jax.block_until_ready(policy_network_apply(x_small, params))
    ref_small = _reference(x_small, w1, b1, w2, b2)
    assert out_small.shape == (B_small, act_dim)
    assert jnp.allclose(out_small, ref_small, atol=1e-5, rtol=1e-5)

    # Batched case exercising the grid (multiple batch tiles, non-tile-multiple B).
    B_big = 1000
    x_big = jax.random.normal(kx2, (B_big, obs_dim), jnp.float32)
    out_big = jax.block_until_ready(
        policy_network_apply(x_big, params, block_b=256))
    ref_big = _reference(x_big, w1, b1, w2, b2)
    assert out_big.shape == (B_big, act_dim)
    assert jnp.allclose(out_big, ref_big, atol=1e-5, rtol=1e-5)

    # Narrow-compute (bf16 MXU operands, f32 accumulation) path with looser tolerance.
    out_bf16 = jax.block_until_ready(
        policy_network_forward(x_small, w1, b1, w2, b2, compute_dtype=jnp.bfloat16))
    assert out_bf16.shape == (B_small, act_dim)
    assert jnp.allclose(out_bf16, ref_small, atol=3e-2, rtol=3e-2)

    print("KERNEL_OK")
</pallas_src>

<mosaic_0001>
module attributes {stable_mosaic.version = 11 : i64} {
  func.func @mlp_kernel(%arg0: i32, %arg1: memref<8x32xf32, #tpu.memory_space<vmem>>, %arg2: memref<32x128xf32, #tpu.memory_space<vmem>>, %arg3: memref<1x128xf32, #tpu.memory_space<vmem>>, %arg4: memref<128x8xf32, #tpu.memory_space<vmem>>, %arg5: memref<1x8xf32, #tpu.memory_space<vmem>>, %arg6: memref<8x8xf32, #tpu.memory_space<vmem>>) attributes {dimension_semantics = [#tpu.dimension_semantics<parallel>], iteration_bounds = array<i64: 1>, scalar_prefetch = 0 : i64, scratch_operands = 0 : i64, tpu.core_type = #tpu.core_type<tc>, window_params = [{transform_indices = @transform_0, window_bounds = array<i64: 8, 32>}, {pipeline_mode = #tpu.pipeline_mode<synchronous>, transform_indices = @transform_1, window_bounds = array<i64: 32, 128>}, {pipeline_mode = #tpu.pipeline_mode<synchronous>, transform_indices = @transform_2, window_bounds = array<i64: 1, 128>}, {pipeline_mode = #tpu.pipeline_mode<synchronous>, transform_indices = @transform_3, window_bounds = array<i64: 128, 8>}, {pipeline_mode = #tpu.pipeline_mode<synchronous>, transform_indices = @transform_4, window_bounds = array<i64: 1, 8>}, {transform_indices = @transform_5, window_bounds = array<i64: 8, 8>}]} {
    %c0 = arith.constant 0 : index
    %c0_0 = arith.constant 0 : index
    %0 = vector.load %arg1[%c0, %c0_0] : memref<8x32xf32, #tpu.memory_space<vmem>>, vector<8x32xf32>
    %c0_1 = arith.constant 0 : index
    %c0_2 = arith.constant 0 : index
    %1 = vector.load %arg2[%c0_1, %c0_2] : memref<32x128xf32, #tpu.memory_space<vmem>>, vector<32x128xf32>
    %cst = arith.constant dense<0.000000e+00> : vector<8x128xf32>
    %2 = tpu.matmul %0, %1, %cst {dimension_numbers = #tpu.dot_dimension_numbers<[1], [0], [0], [1], [0, 0, 1, 1], [], []>} : vector<8x32xf32>, vector<32x128xf32>, vector<8x128xf32> -> vector<8x128xf32>
    %c0_3 = arith.constant 0 : index
    %c0_4 = arith.constant 0 : index
    %3 = vector.load %arg3[%c0_3, %c0_4] : memref<1x128xf32, #tpu.memory_space<vmem>>, vector<1x128xf32>
    %4 = vector.broadcast %3 : vector<1x128xf32> to vector<8x128xf32>
    %5 = arith.addf %2, %4 : vector<8x128xf32>
    %cst_5 = arith.constant 0.000000e+00 : f32
    %6 = vector.broadcast %cst_5 : f32 to vector<8x128xf32>
    %7 = arith.maximumf %5, %6 : vector<8x128xf32>
    %c0_6 = arith.constant 0 : index
    %c0_7 = arith.constant 0 : index
    %8 = vector.load %arg4[%c0_6, %c0_7] : memref<128x8xf32, #tpu.memory_space<vmem>>, vector<128x8xf32>
    %cst_8 = arith.constant dense<0.000000e+00> : vector<8x8xf32>
    %9 = tpu.matmul %7, %8, %cst_8 {dimension_numbers = #tpu.dot_dimension_numbers<[1], [0], [0], [1], [0, 0, 1, 1], [], []>} : vector<8x128xf32>, vector<128x8xf32>, vector<8x8xf32> -> vector<8x8xf32>
    %c0_9 = arith.constant 0 : index
    %c0_10 = arith.constant 0 : index
    %10 = vector.load %arg5[%c0_9, %c0_10] : memref<1x8xf32, #tpu.memory_space<vmem>>, vector<1x8xf32>
    %11 = vector.broadcast %10 : vector<1x8xf32> to vector<8x8xf32>
    %12 = arith.addf %9, %11 : vector<8x8xf32>
    %c0_11 = arith.constant 0 : index
    %c0_12 = arith.constant 0 : index
    %13 = vector.load %arg6[%c0_11, %c0_12] : memref<8x8xf32, #tpu.memory_space<vmem>>, vector<8x8xf32>
    tpu.vector_store %arg6[%c0_11, %c0_12], %12 {strides = array<i32>} : memref<8x8xf32, #tpu.memory_space<vmem>>, vector<8x8xf32>,
    return
  }
  func.func @transform_0(%arg0: i32) -> (i32, i32) {
    %c0_i32 = arith.constant 0 : i32
    %c0_i32_0 = arith.constant 0 : i32
    return %arg0, %c0_i32 : i32, i32
  }
  func.func @transform_1(%arg0: i32) -> (i32, i32) {
    %c0_i32 = arith.constant 0 : i32
    %c0_i32_0 = arith.constant 0 : i32
    %c0_i32_1 = arith.constant 0 : i32
    return %c0_i32, %c0_i32_0 : i32, i32
  }
  func.func @transform_2(%arg0: i32) -> (i32, i32) {
    %c0_i32 = arith.constant 0 : i32
    %c0_i32_0 = arith.constant 0 : i32
    %c0_i32_1 = arith.constant 0 : i32
    return %c0_i32, %c0_i32_0 : i32, i32
  }
  func.func @transform_3(%arg0: i32) -> (i32, i32) {
    %c0_i32 = arith.constant 0 : i32
    %c0_i32_0 = arith.constant 0 : i32
    %c0_i32_1 = arith.constant 0 : i32
    return %c0_i32, %c0_i32_0 : i32, i32
  }
  func.func @transform_4(%arg0: i32) -> (i32, i32) {
    %c0_i32 = arith.constant 0 : i32
    %c0_i32_0 = arith.constant 0 : i32
    %c0_i32_1 = arith.constant 0 : i32
    return %c0_i32, %c0_i32_0 : i32, i32
  }
  func.func @transform_5(%arg0: i32) -> (i32, i32) {
    %c0_i32 = arith.constant 0 : i32
    %c0_i32_0 = arith.constant 0 : i32
    return %arg0, %c0_i32 : i32, i32
  }
}

</mosaic_0001>

<llo_original>
// kernel: tpu_custom_call.1
$region0: #{tpu_custom_call.1}
  #allocation0 [shape = 'u32[]', space=smem, size = 0x4, offset = 0x4, fixed_abs, tag = 'smem constant byte address 0x4 - core index']
  #allocation1 [shape = 'u32[144,128]{1,0:T(1,128)}', space=vmem, size = 0x12000, scoped, tag = 'internal scratch']
  %s0 = inlined_call_operand.vmem [shape: f32[8,32], index: 0, kind: input, shape index: {}]
  %s1 = inlined_call_operand.vmem [shape: f32[32,128], index: 1, kind: input, shape index: {}]
  %s2 = inlined_call_operand.vmem [shape: f32[1,128], index: 2, kind: input, shape index: {}]
  %s3 = inlined_call_operand.vmem [shape: f32[128,8], index: 3, kind: input, shape index: {}]
  %s4 = inlined_call_operand.vmem [shape: f32[1,8], index: 4, kind: input, shape index: {}]
  %s5 = inlined_call_operand.hbm [shape: f32[8,8], index: 5, kind: output, shape index: {}]
  %s6 = sld [smem:[#allocation0]]
  $region30: #{tpu_custom_call.1} parent=0
    _
  %s8 = ssub.s32 1, %s6
  %s9 = scalar_select 0, %s8, %s6
  $region1: #{tpu_custom_call.1} parent=0
    #allocation2 [shape = 'u8[4096]{0}', space=vmem, size = 0x1000, scoped, tag = 'output window, operand 0, single buffered']
    #allocation3 [shape = 's32[1]{0}', space=sflag, size = 0x4, scoped, tag = 'scoped memory for tpu_custom_call.1']
    %10 = vsyncpa [#allocation3], 0
    // Predicated region
    $region2: #{tpu_custom_call.1} parent=1 // pred_check
      _
    $region3: #{tpu_custom_call.1} parent=1 // pred_check_branch
      %12 = sbr.rel (0) target = $region5
    $region4: #{tpu_custom_call.1} parent=1 // pred_region
      _
    $region5: #{tpu_custom_call.1} parent=1 // pred_fallthru
      _
    // Predicated region
    $region6: #{tpu_custom_call.1} parent=1 // pred_check
      _
    $region7: #{tpu_custom_call.1} parent=1 // pred_check_branch
      %14 = sbr.rel (0) target = $region9
    $region8: #{tpu_custom_call.1} parent=1 // pred_region
      _
    $region9: #{tpu_custom_call.1} parent=1 // pred_fallthru
      _
    // Predicated region
    $region10: #{tpu_custom_call.1} parent=1 // pred_check
      _
    $region11: #{tpu_custom_call.1} parent=1 // pred_check_branch
      %16 = sbr.rel (0) target = $region13
    $region12: #{tpu_custom_call.1} parent=1 // pred_region
      _
    $region13: #{tpu_custom_call.1} parent=1 // pred_fallthru
      _
    // Predicated region
    $region14: #{tpu_custom_call.1} parent=1 // pred_check
      _
    $region15: #{tpu_custom_call.1} parent=1 // pred_check_branch
      %18 = sbr.rel (0) target = $region17
    $region16: #{tpu_custom_call.1} parent=1 // pred_region
      _
    $region17: #{tpu_custom_call.1} parent=1 // pred_fallthru
      _
    // Predicated region
    $region18: #{tpu_custom_call.1} parent=1 // pred_check
      _
    $region19: #{tpu_custom_call.1} parent=1 // pred_check_branch
      %20 = sbr.rel (0) target = $region21
    $region20: #{tpu_custom_call.1} parent=1 // pred_region
      _
    $region21: #{tpu_custom_call.1} parent=1 // pred_fallthru
      _
    %v21 = vld [vmem:[%s0] sm:$0xff]
    %v22 = vld [vmem:[%s1] sm:$0xff]
    %v23 = vld [vmem:[%s1 + $0x8] sm:$0xff]
    %v24 = vld [vmem:[%s1 + $0x10] sm:$0xff]
    %v25 = vld [vmem:[%s1 + $0x18] sm:$0xff]
    %v26 = vld [vmem:[%s2] sm:$0x1]
    %v28 = vlaneseq
    %v29 = vshrl.u32 %v28, 7
    %v30 = vsub.s32 0, %v29
    %v31 = vrot.slane %v26, %v30
    %vm33 = vcmask 261120
    %v35 = vsel %vm33, %v21, 0
    %37 = vmatprep.subr.mxu0 0.0
    %38 = vmatpush1.msra.mxu0 %v22
    %39 = vmatprep.subr.mxu0 0.0
    %40 = vmatpush1.msra.mxu0 %v23
    %41 = vmatprep.subr.mxu0 0.0
    %42 = vmatpush1.msra.mxu0 %v24
    %43 = vmatprep.subr.mxu0 0.0
    %44 = vmatpush1.msra.mxu0 %v25
    %45 = vmatprep.subr.mxu0 0.0
    %46 = vmatpush1.msra.mxu0 0.0
    %47 = vmatprep.subr.mxu0 0.0
    %48 = vmatpush1.msra.mxu0 0.0
    %49 = vmatprep.subr.mxu0 0.0
    %50 = vmatpush1.msra.mxu0 0.0
    %51 = vmatprep.subr.mxu0 0.0
    %52 = vmatpush1.msra.mxu0 0.0
    %53 = vmatprep.subr.mxu0 0.0
    %54 = vmatpush1.msra.mxu0 0.0
    %55 = vmatprep.subr.mxu0 0.0
    %56 = vmatpush1.msra.mxu0 0.0
    %57 = vmatprep.subr.mxu0 0.0
    %58 = vmatpush1.msra.mxu0 0.0
    %59 = vmatprep.subr.mxu0 0.0
    %60 = vmatpush1.msra.mxu0 0.0
    %61 = vmatprep.subr.mxu0 0.0
    %62 = vmatpush1.msra.mxu0 0.0
    %63 = vmatprep.subr.mxu0 0.0
    %64 = vmatpush1.msra.mxu0 0.0
    %65 = vmatprep.subr.mxu0 0.0
    %66 = vmatpush1.msra.mxu0 0.0
    %67 = vmatprep.subr.mxu0 0.0
    %68 = vmatpush1.msra.mxu0 0.0
    %69 = vmatprep.subr.mxu0 0.0
    %70 = vmatpush1.msra.mxu0 0.0
    %71 = vmatprep.subr.mxu0 0.0
    %72 = vmatpush1.msra.mxu0 0.0
    %73 = vmatprep.subr.mxu0 0.0
    %74 = vmatpush1.msra.mxu0 0.0
    %75 = vmatprep.subr.mxu0 0.0
    %76 = vmatpush1.msra.mxu0 0.0
    %77 = vmatprep.subr.mxu0 0.0
    %78 = vmatpush1.msra.mxu0 0.0
    %79 = vmatprep.subr.mxu0 0.0
    %80 = vmatpush1.msra.mxu0 0.0
    %81 = vmatprep.subr.mxu0 0.0
    %82 = vmatpush1.msra.mxu0 0.0
    %83 = vmatprep.subr.mxu0 0.0
    %84 = vmatpush1.msra.mxu0 0.0
    %85 = vmatprep.subr.mxu0 0.0
    %86 = vmatpush1.msra.mxu0 0.0
    %87 = vmatprep.subr.mxu0 0.0
    %88 = vmatpush1.msra.mxu0 0.0
    %89 = vmatprep.subr.mxu0 0.0
    %90 = vmatpush1.msra.mxu0 0.0
    %91 = vmatprep.subr.mxu0 0.0
    %92 = vmatpush1.msra.mxu0 0.0
    %93 = vmatprep.subr.mxu0 0.0
    %94 = vmatpush1.msra.mxu0 0.0
    %95 = vmatprep.subr.mxu0 0.0
    %96 = vmatpush1.msra.mxu0 0.0
    %97 = vmatprep.subr.mxu0 0.0
    %98 = vmatpush1.msra.mxu0 0.0
    %99 = vmatprep.subr.mxu0 0.0
    %100 = vmatpush1.msra.mxu0 0.0
    %101 = vmatprep.mubr.f32.mxu0 0.0
    %102 = vmatmul.mubr.f32.gmra.mrb[0].mxu0 %v35
    %v103 = vpop.f32.mrb[0].mxu0
    %v104 = vadd.f32 %v31, %v103
    %v105 = vpop.f32.mrb[0].mxu0
    %106 = vdwg.mxu0
    %v107 = vmax.f32 %v104, 0.0
    %v108 = vld [vmem:[%s3] sm:$0xff]
    %v109 = vld [vmem:[%s3 + $0x8] sm:$0xff]
    %v110 = vld [vmem:[%s3 + $0x10] sm:$0xff]
    %v111 = vld [vmem:[%s3 + $0x18] sm:$0xff]
    %v112 = vld [vmem:[%s3 + $0x20] sm:$0xff]
    %v113 = vld [vmem:[%s3 + $0x28] sm:$0xff]
    %v114 = vld [vmem:[%s3 + $0x30] sm:$0xff]
    %v115 = vld [vmem:[%s3 + $0x38] sm:$0xff]
    %v116 = vld [vmem:[%s3 + $0x40] sm:$0xff]
    %v117 = vld [vmem:[%s3 + $0x48] sm:$0xff]
    %v118 = vld [vmem:[%s3 + $0x50] sm:$0xff]
    %v119 = vld [vmem:[%s3 + $0x58] sm:$0xff]
    %v120 = vld [vmem:[%s3 + $0x60] sm:$0xff]
    %v121 = vld [vmem:[%s3 + $0x68] sm:$0xff]
    %v122 = vld [vmem:[%s3 + $0x70] sm:$0xff]
    %v123 = vld [vmem:[%s3 + $0x78] sm:$0xff]
    %v124 = vld [vmem:[%s4] sm:$0x1]
    %v126 = vlaneseq
    %v127 = vshrl.u32 %v126, 7
    %v128 = vsub.s32 0, %v127
    %v129 = vrot.slane %v124, %v128
    %131 = vmatprep.subr.mxu0 0.0
    %132 = vmatpush1.msra.mxu0 %v108
    %133 = vmatprep.subr.mxu0 0.0
    %134 = vmatpush1.msra.mxu0 %v109
    %135 = vmatprep.subr.mxu0 0.0
    %136 = vmatpush1.msra.mxu0 %v110
    %137 = vmatprep.subr.mxu0 0.0
    %138 = vmatpush1.msra.mxu0 %v111
    %139 = vmatprep.subr.mxu0 0.0
    %140 = vmatpush1.msra.mxu0 %v112
    %141 = vmatprep.subr.mxu0 0.0
    %142 = vmatpush1.msra.mxu0 %v113
    %143 = vmatprep.subr.mxu0 0.0
    %144 = vmatpush1.msra.mxu0 %v114
    %145 = vmatprep.subr.mxu0 0.0
    %146 = vmatpush1.msra.mxu0 %v115
    %147 = vmatprep.subr.mxu0 0.0
    %148 = vmatpush1.msra.mxu0 %v116
    %149 = vmatprep.subr.mxu0 0.0
    %150 = vmatpush1.msra.mxu0 %v117
    %151 = vmatprep.subr.mxu0 0.0
    %152 = vmatpush1.msra.mxu0 %v118
    %153 = vmatprep.subr.mxu0 0.0
    %154 = vmatpush1.msra.mxu0 %v119
    %155 = vmatprep.subr.mxu0 0.0
    %156 = vmatpush1.msra.mxu0 %v120
    %157 = vmatprep.subr.mxu0 0.0
    %158 = vmatpush1.msra.mxu0 %v121
    %159 = vmatprep.subr.mxu0 0.0
    %160 = vmatpush1.msra.mxu0 %v122
    %161 = vmatprep.subr.mxu0 0.0
    %162 = vmatpush1.msra.mxu0 %v123
    %163 = vmatprep.subr.mxu0 0.0
    %164 = vmatpush1.msra.mxu0 0.0
    %165 = vmatprep.subr.mxu0 0.0
    %166 = vmatpush1.msra.mxu0 0.0
    %167 = vmatprep.subr.mxu0 0.0
    %168 = vmatpush1.msra.mxu0 0.0
    %169 = vmatprep.subr.mxu0 0.0
    %170 = vmatpush1.msra.mxu0 0.0
    %171 = vmatprep.subr.mxu0 0.0
    %172 = vmatpush1.msra.mxu0 0.0
    %173 = vmatprep.subr.mxu0 0.0
    %174 = vmatpush1.msra.mxu0 0.0
    %175 = vmatprep.subr.mxu0 0.0
    %176 = vmatpush1.msra.mxu0 0.0
    %177 = vmatprep.subr.mxu0 0.0
    %178 = vmatpush1.msra.mxu0 0.0
    %179 = vmatprep.subr.mxu0 0.0
    %180 = vmatpush1.msra.mxu0 0.0
    %181 = vmatprep.subr.mxu0 0.0
    %182 = vmatpush1.msra.mxu0 0.0
    %183 = vmatprep.subr.mxu0 0.0
    %184 = vmatpush1.msra.mxu0 0.0
    %185 = vmatprep.subr.mxu0 0.0
    %186 = vmatpush1.msra.mxu0 0.0
    %187 = vmatprep.subr.mxu0 0.0
    %188 = vmatpush1.msra.mxu0 0.0
    %189 = vmatprep.subr.mxu0 0.0
    %190 = vmatpush1.msra.mxu0 0.0
    %191 = vmatprep.subr.mxu0 0.0
    %192 = vmatpush1.msra.mxu0 0.0
    %193 = vmatprep.subr.mxu0 0.0
    %194 = vmatpush1.msra.mxu0 0.0
    %195 = vmatprep.mubr.f32.mxu0 0.0
    %196 = vmatmul.mubr.f32.gmra.mrb[0].mxu0 %v107
    %v197 = vpop.f32.mrb[0].mxu0
    %v198 = vadd.f32 %v129, %v197
    %v199 = vpop.f32.mrb[0].mxu0
    %200 = vdwg.mxu0
    %vm201 = vcmask 64512
    %202 = vst.msk [vmem:[#allocation2] sm:$0xff] %vm201, %v198
    // Predicated region
    $region22: #{tpu_custom_call.1} parent=1 // pred_check
      _
    $region23: #{tpu_custom_call.1} parent=1 // pred_check_branch
      %204 = sbr.rel (0) target = $region25
    $region24: #{tpu_custom_call.1} parent=1 // pred_region
      %s206 = ssub.s32 128, 128
      %207 = vsyncadd [#allocation3], %s206
      %s209 = sshll.u32 [#allocation2], 4
      %s210 = int_to_ptr.vmem [resolvable:$true] %s209
      %212 = dma.vmem_to_hbm [thread:$0]  %s210, 128, %s5, [#allocation3]
    $region25: #{tpu_custom_call.1} parent=1 // pred_fallthru
      _
    // Predicated region
    $region26: #{tpu_custom_call.1} parent=1 // pred_check
      _
    $region27: #{tpu_custom_call.1} parent=1 // pred_check_branch
      %214 = sbr.rel (0) target = $region29
    $region28: #{tpu_custom_call.1} parent=1 // pred_region
      %215 = dma.done [#allocation3], 128
    $region29: #{tpu_custom_call.1} parent=1 // pred_fallthru
      _
    %216 = vsyncpa [#allocation3], 1

</llo_original>
